<compile_context>
chip_gen: v5e
topology: v5e:2x2
jax: 0.10.0
libtpu: 0.0.40
codegen_flags: <defaults>
</compile_context>

<pallas_src>
import functools

import jax
import jax.numpy as jnp
from jax.experimental import pallas as pl
from jax.experimental.pallas import tpu as pltpu

_LANE = 128
_SUBLANE = 8


def _round_up(n, m):
    return (n + m - 1) // m * m


def _mlp_kernel(
    x_ref,
    w1_ref, b1_ref,
    w2_ref, b2_ref,
    w3_ref, b3_ref,
    w4_ref, b4_ref,
    w5_ref, b5_ref,
    out_ref,
    *, input_size, vpu_fc1, compute_dtype,
):
    # ---- fc1 (+bn1 folded) ----
    # K == input_size is tiny (e.g. 8). MXU push cadence scales with M, not K,
    # so a K=8 matmul costs as much MXU time as a K=256 layer while being
    # <1% of the FLOPs. Run it on the (nearly idle) VPU instead: unrolled
    # broadcast multiply-accumulates in f32.
    if vpu_fc1:
        xf = x_ref[...].astype(jnp.float32)
        w1 = w1_ref[...].astype(jnp.float32)
        h = jnp.zeros((xf.shape[0], w1.shape[1]), jnp.float32)
        for k in range(input_size):                      # unrolled at trace time
            h = h + xf[:, k:k + 1] * w1[k:k + 1, :]
        h = h + b1_ref[...].astype(jnp.float32)
    else:
        h = jnp.dot(x_ref[...], w1_ref[...],
                    preferred_element_type=jnp.float32)
        h = h + b1_ref[...].astype(jnp.float32)
    h = jnp.maximum(h, 0.0)

    def linear(h, w_ref, b_ref):
        # bf16 (or f32) MXU operands, f32 accumulation, f32 bias add.
        o = jnp.dot(h.astype(compute_dtype), w_ref[...],
                    preferred_element_type=jnp.float32)
        return o + b_ref[...].astype(jnp.float32)

    h = jnp.maximum(linear(h, w2_ref, b2_ref), 0.0)      # fc2 (+bn2) -> relu
    h = jnp.maximum(linear(h, w3_ref, b3_ref), 0.0)      # fc3 (+bn3) -> relu
    h = jnp.maximum(linear(h, w4_ref, b4_ref), 0.0)      # fc4 (+bn4) -> relu
    out = linear(h, w5_ref, b5_ref)                      # fc5, lane-padded
    out_ref[...] = out.astype(out_ref.dtype)


def crop_classifier_forward(x, params, *, tile_b=None,
                            compute_dtype=jnp.bfloat16):
    """x: (batch, input_size) float32. params: dict from init_params.

    tile_b: batch-tile size (rows per grid step). Default (None) picks
      1024-4096 rows targeting ~8 grid steps (even count for v7x's 2 TCs).
      VMEM is not the constraint on any generation at these sizes; an explicit
      vmem_limit_bytes is set so v5e's 16 MiB scoped default does not bite.
    compute_dtype: MXU operand dtype (bf16 default; f32 accumulation always).
    """
    batch, input_size = x.shape
    num_classes = params["w5"].shape[1]

    # ---- Fold BatchNorm (eval) into the Linear weights/biases (exact) ----
    folded = []
    for layer in range(1, 5):
        w, b = params[f"w{layer}"], params[f"b{layer}"]
        s, t = params[f"s{layer}"], params[f"t{layer}"]     # (1, out) each
        folded.append((w * s, b * s + t))

    # ---- Pad final layer to a lane-dense (multiple of 128) output width ----
    n_pad = _round_up(num_classes, _LANE)
    w5 = jnp.zeros((params["w5"].shape[0], n_pad), jnp.float32)
    w5 = w5.at[:, :num_classes].set(params["w5"])
    b5 = jnp.zeros((1, n_pad), jnp.float32).at[:, :num_classes].set(params["b5"])
    folded.append((w5, b5))

    # bf16 (or f32) MXU operands; biases kept f32 (tiny, preserves accuracy).
    folded = [(w.astype(compute_dtype), b.astype(jnp.float32))
              for (w, b) in folded]

    # ---- Batch tile selection ----
    if tile_b is None:
        # ~8 grid steps of 1K-4K rows: amortizes per-step overhead (~0.35us)
        # while keeping x-load / out-writeback pipelined against compute.
        tile_b = min(4096, max(1024, _round_up(pl.cdiv(batch, 8), 256)))
        tile_b = min(tile_b, _round_up(batch, _SUBLANE))
        steps = pl.cdiv(batch, tile_b)
        if steps > 1 and steps % 2:          # even step count -> both v7x TCs busy
            tile_b = _round_up(pl.cdiv(batch, steps + 1), _SUBLANE)
    tile_b = _round_up(max(_SUBLANE, min(tile_b, _round_up(batch, _SUBLANE))),
                       _SUBLANE)
    padded_batch = _round_up(batch, tile_b)
    if padded_batch != batch:
        x = jnp.pad(x, ((0, padded_batch - batch), (0, 0)))
    x = x.astype(compute_dtype)
    grid = (padded_batch // tile_b,)

    operands = [x]
    weight_specs = []
    for (w, b) in folded:
        operands += [w, b]
        # Constant index_map: weights/biases stay VMEM-resident across the grid.
        weight_specs += [
            pl.BlockSpec(w.shape, lambda i: (0, 0)),
            pl.BlockSpec(b.shape, lambda i: (0, 0)),
        ]

    # ---- CostEstimate derived from the actual folded operand shapes ----
    flops = 2 * padded_batch * sum(int(w.shape[0]) * int(w.shape[1])
                                   for (w, _) in folded)
    bytes_accessed = (
        x.size * x.dtype.itemsize
        + sum(w.size * w.dtype.itemsize + b.size * b.dtype.itemsize
              for (w, b) in folded)
        + padded_batch * n_pad * 4)
    cost = pl.CostEstimate(flops=flops, transcendentals=0,
                           bytes_accessed=bytes_accessed)

    kernel = functools.partial(
        _mlp_kernel,
        input_size=input_size,
        vpu_fc1=input_size <= 32,           # tiny-K first layer -> VPU
        compute_dtype=compute_dtype,
    )

    out_padded = pl.pallas_call(
        kernel,
        out_shape=jax.ShapeDtypeStruct((padded_batch, n_pad), jnp.float32),
        grid=grid,
        in_specs=[pl.BlockSpec((tile_b, input_size), lambda i: (i, 0))]
                 + weight_specs,
        out_specs=pl.BlockSpec((tile_b, n_pad), lambda i: (i, 0)),
        compiler_params=pltpu.CompilerParams(
            dimension_semantics=("parallel",),
            vmem_limit_bytes=64 * 1024 * 1024),   # big tiles OK on v5e too
        cost_estimate=cost,
    )(*operands)

    return out_padded[:batch, :num_classes]


def init_params(key, input_size, num_classes, eps=1e-5):
    """Deterministic synthetic parameters (shapes match the PyTorch module)."""
    dims = [input_size, 128, 256, 256, 128, num_classes]
    params = {}
    keys = jax.random.split(key, 5 * 2 + 4 * 4)
    ki = 0
    for layer in range(5):
        fan_in, fan_out = dims[layer], dims[layer + 1]
        bound = 1.0 / jnp.sqrt(fan_in)
        # Stored as (in, out): transpose of PyTorch's (out, in) Linear weight.
        w = jax.random.uniform(keys[ki], (fan_in, fan_out), jnp.float32, -bound, bound); ki += 1
        b = jax.random.uniform(keys[ki], (1, fan_out), jnp.float32, -bound, bound); ki += 1
        params[f"w{layer + 1}"] = w
        params[f"b{layer + 1}"] = b
    for layer in range(4):  # BatchNorm1d for fc1..fc4 outputs (eval stats)
        feat = dims[layer + 1]
        gamma = 1.0 + 0.1 * jax.random.normal(keys[ki], (1, feat), jnp.float32); ki += 1
        beta = 0.1 * jax.random.normal(keys[ki], (1, feat), jnp.float32); ki += 1
        running_mean = 0.05 * jax.random.normal(keys[ki], (1, feat), jnp.float32); ki += 1
        running_var = jnp.abs(1.0 + 0.1 * jax.random.normal(keys[ki], (1, feat), jnp.float32)); ki += 1
        scale = gamma / jnp.sqrt(running_var + eps)
        shift = beta - running_mean * scale
        params[f"s{layer + 1}"] = scale
        params[f"t{layer + 1}"] = shift
    return params


def _reference_forward(x, params):
    """Pure-JAX reference (Linear -> BN(eval) -> ReLU x4, then Linear)."""
    h = x
    for layer in range(1, 5):
        h = h @ params[f"w{layer}"] + params[f"b{layer}"]
        h = h * params[f"s{layer}"] + params[f"t{layer}"]
        h = jnp.maximum(h, 0.0)
    return h @ params["w5"] + params["b5"]


if __name__ == "__main__":
    input_size = 8     # small agronomic feature vector
    num_classes = 16
    batch = 40         # not a multiple of the tile -> exercises padding + grid

    key = jax.random.PRNGKey(0)
    kx, kp = jax.random.split(key)
    x = jax.random.normal(kx, (batch, input_size), jnp.float32)
    params = init_params(kp, input_size, num_classes)

    ref = _reference_forward(x, params)

    # 1) f32 path with a small tile -> multi-step grid + batch padding, tight tol.
    out_f32 = jax.block_until_ready(
        crop_classifier_forward(x, params, tile_b=16, compute_dtype=jnp.float32))
    assert out_f32.shape == (batch, num_classes)
    assert jnp.allclose(out_f32, ref, atol=1e-4, rtol=1e-4), \
        "f32 kernel mismatch vs JAX reference"

    # 2) Default perf path: bf16 MXU operands (f32 accumulate), auto batch tile.
    out_bf16 = jax.block_until_ready(crop_classifier_forward(x, params))
    assert out_bf16.shape == (batch, num_classes)
    rel_err = jnp.max(jnp.abs(out_bf16 - ref)) / (jnp.max(jnp.abs(ref)) + 1e-6)
    assert rel_err < 5e-2, f"bf16 kernel rel err too large: {rel_err}"

    print("KERNEL_OK")
</pallas_src>

<mosaic_0001>
module attributes {stable_mosaic.version = 11 : i64} {
  func.func @_mlp_kernel(%arg0: i32, %arg1: memref<16x8xf32, #tpu.memory_space<vmem>>, %arg2: memref<8x128xf32, #tpu.memory_space<vmem>>, %arg3: memref<1x128xf32, #tpu.memory_space<vmem>>, %arg4: memref<128x256xf32, #tpu.memory_space<vmem>>, %arg5: memref<1x256xf32, #tpu.memory_space<vmem>>, %arg6: memref<256x256xf32, #tpu.memory_space<vmem>>, %arg7: memref<1x256xf32, #tpu.memory_space<vmem>>, %arg8: memref<256x128xf32, #tpu.memory_space<vmem>>, %arg9: memref<1x128xf32, #tpu.memory_space<vmem>>, %arg10: memref<128x128xf32, #tpu.memory_space<vmem>>, %arg11: memref<1x128xf32, #tpu.memory_space<vmem>>, %arg12: memref<16x128xf32, #tpu.memory_space<vmem>>) attributes {dimension_semantics = [#tpu.dimension_semantics<parallel>], iteration_bounds = array<i64: 3>, scalar_prefetch = 0 : i64, scratch_operands = 0 : i64, tpu.core_type = #tpu.core_type<tc>, window_params = [{transform_indices = @transform_0, window_bounds = array<i64: 16, 8>}, {pipeline_mode = #tpu.pipeline_mode<synchronous>, transform_indices = @transform_1, window_bounds = array<i64: 8, 128>}, {pipeline_mode = #tpu.pipeline_mode<synchronous>, transform_indices = @transform_2, window_bounds = array<i64: 1, 128>}, {pipeline_mode = #tpu.pipeline_mode<synchronous>, transform_indices = @transform_3, window_bounds = array<i64: 128, 256>}, {pipeline_mode = #tpu.pipeline_mode<synchronous>, transform_indices = @transform_4, window_bounds = array<i64: 1, 256>}, {pipeline_mode = #tpu.pipeline_mode<synchronous>, transform_indices = @transform_5, window_bounds = array<i64: 256, 256>}, {pipeline_mode = #tpu.pipeline_mode<synchronous>, transform_indices = @transform_6, window_bounds = array<i64: 1, 256>}, {pipeline_mode = #tpu.pipeline_mode<synchronous>, transform_indices = @transform_7, window_bounds = array<i64: 256, 128>}, {pipeline_mode = #tpu.pipeline_mode<synchronous>, transform_indices = @transform_8, window_bounds = array<i64: 1, 128>}, {pipeline_mode = #tpu.pipeline_mode<synchronous>, transform_indices = @transform_9, window_bounds = array<i64: 128, 128>}, {pipeline_mode = #tpu.pipeline_mode<synchronous>, transform_indices = @transform_10, window_bounds = array<i64: 1, 128>}, {transform_indices = @transform_11, window_bounds = array<i64: 16, 128>}]} {
    %c0 = arith.constant 0 : index
    %c0_0 = arith.constant 0 : index
    %0 = vector.load %arg1[%c0, %c0_0] : memref<16x8xf32, #tpu.memory_space<vmem>>, vector<16x8xf32>
    %c0_1 = arith.constant 0 : index
    %c0_2 = arith.constant 0 : index
    %1 = vector.load %arg2[%c0_1, %c0_2] : memref<8x128xf32, #tpu.memory_space<vmem>>, vector<8x128xf32>
    %cst = arith.constant 0.000000e+00 : f32
    %2 = vector.broadcast %cst : f32 to vector<16x128xf32>
    %3 = vector.extract_strided_slice %0 {offsets = [0, 0], sizes = [16, 1], strides = [1, 1]} : vector<16x8xf32> to vector<16x1xf32>
    %4 = vector.extract_strided_slice %1 {offsets = [0, 0], sizes = [1, 128], strides = [1, 1]} : vector<8x128xf32> to vector<1x128xf32>
    %5 = vector.broadcast %3 : vector<16x1xf32> to vector<16x128xf32>
    %6 = vector.broadcast %4 : vector<1x128xf32> to vector<16x128xf32>
    %7 = arith.mulf %5, %6 : vector<16x128xf32>
    %8 = arith.addf %2, %7 : vector<16x128xf32>
    %9 = vector.extract_strided_slice %0 {offsets = [0, 1], sizes = [16, 1], strides = [1, 1]} : vector<16x8xf32> to vector<16x1xf32>
    %10 = vector.extract_strided_slice %1 {offsets = [1, 0], sizes = [1, 128], strides = [1, 1]} : vector<8x128xf32> to vector<1x128xf32>
    %11 = vector.broadcast %9 : vector<16x1xf32> to vector<16x128xf32>
    %12 = vector.broadcast %10 : vector<1x128xf32> to vector<16x128xf32>
    %13 = arith.mulf %11, %12 : vector<16x128xf32>
    %14 = arith.addf %8, %13 : vector<16x128xf32>
    %15 = vector.extract_strided_slice %0 {offsets = [0, 2], sizes = [16, 1], strides = [1, 1]} : vector<16x8xf32> to vector<16x1xf32>
    %16 = vector.extract_strided_slice %1 {offsets = [2, 0], sizes = [1, 128], strides = [1, 1]} : vector<8x128xf32> to vector<1x128xf32>
    %17 = vector.broadcast %15 : vector<16x1xf32> to vector<16x128xf32>
    %18 = vector.broadcast %16 : vector<1x128xf32> to vector<16x128xf32>
    %19 = arith.mulf %17, %18 : vector<16x128xf32>
    %20 = arith.addf %14, %19 : vector<16x128xf32>
    %21 = vector.extract_strided_slice %0 {offsets = [0, 3], sizes = [16, 1], strides = [1, 1]} : vector<16x8xf32> to vector<16x1xf32>
    %22 = vector.extract_strided_slice %1 {offsets = [3, 0], sizes = [1, 128], strides = [1, 1]} : vector<8x128xf32> to vector<1x128xf32>
    %23 = vector.broadcast %21 : vector<16x1xf32> to vector<16x128xf32>
    %24 = vector.broadcast %22 : vector<1x128xf32> to vector<16x128xf32>
    %25 = arith.mulf %23, %24 : vector<16x128xf32>
    %26 = arith.addf %20, %25 : vector<16x128xf32>
    %27 = vector.extract_strided_slice %0 {offsets = [0, 4], sizes = [16, 1], strides = [1, 1]} : vector<16x8xf32> to vector<16x1xf32>
    %28 = vector.extract_strided_slice %1 {offsets = [4, 0], sizes = [1, 128], strides = [1, 1]} : vector<8x128xf32> to vector<1x128xf32>
    %29 = vector.broadcast %27 : vector<16x1xf32> to vector<16x128xf32>
    %30 = vector.broadcast %28 : vector<1x128xf32> to vector<16x128xf32>
    %31 = arith.mulf %29, %30 : vector<16x128xf32>
    %32 = arith.addf %26, %31 : vector<16x128xf32>
    %33 = vector.extract_strided_slice %0 {offsets = [0, 5], sizes = [16, 1], strides = [1, 1]} : vector<16x8xf32> to vector<16x1xf32>
    %34 = vector.extract_strided_slice %1 {offsets = [5, 0], sizes = [1, 128], strides = [1, 1]} : vector<8x128xf32> to vector<1x128xf32>
    %35 = vector.broadcast %33 : vector<16x1xf32> to vector<16x128xf32>
    %36 = vector.broadcast %34 : vector<1x128xf32> to vector<16x128xf32>
    %37 = arith.mulf %35, %36 : vector<16x128xf32>
    %38 = arith.addf %32, %37 : vector<16x128xf32>
    %39 = vector.extract_strided_slice %0 {offsets = [0, 6], sizes = [16, 1], strides = [1, 1]} : vector<16x8xf32> to vector<16x1xf32>
    %40 = vector.extract_strided_slice %1 {offsets = [6, 0], sizes = [1, 128], strides = [1, 1]} : vector<8x128xf32> to vector<1x128xf32>
    %41 = vector.broadcast %39 : vector<16x1xf32> to vector<16x128xf32>
    %42 = vector.broadcast %40 : vector<1x128xf32> to vector<16x128xf32>
    %43 = arith.mulf %41, %42 : vector<16x128xf32>
    %44 = arith.addf %38, %43 : vector<16x128xf32>
    %45 = vector.extract_strided_slice %0 {offsets = [0, 7], sizes = [16, 1], strides = [1, 1]} : vector<16x8xf32> to vector<16x1xf32>
    %46 = vector.extract_strided_slice %1 {offsets = [7, 0], sizes = [1, 128], strides = [1, 1]} : vector<8x128xf32> to vector<1x128xf32>
    %47 = vector.broadcast %45 : vector<16x1xf32> to vector<16x128xf32>
    %48 = vector.broadcast %46 : vector<1x128xf32> to vector<16x128xf32>
    %49 = arith.mulf %47, %48 : vector<16x128xf32>
    %50 = arith.addf %44, %49 : vector<16x128xf32>
    %c0_3 = arith.constant 0 : index
    %c0_4 = arith.constant 0 : index
    %51 = vector.load %arg3[%c0_3, %c0_4] : memref<1x128xf32, #tpu.memory_space<vmem>>, vector<1x128xf32>
    %52 = vector.broadcast %51 : vector<1x128xf32> to vector<16x128xf32>
    %53 = arith.addf %50, %52 : vector<16x128xf32>
    %cst_5 = arith.constant 0.000000e+00 : f32
    %54 = vector.broadcast %cst_5 : f32 to vector<16x128xf32>
    %55 = arith.maximumf %53, %54 : vector<16x128xf32>
    %c0_6 = arith.constant 0 : index
    %c0_7 = arith.constant 0 : index
    %56 = vector.load %arg4[%c0_6, %c0_7] : memref<128x256xf32, #tpu.memory_space<vmem>>, vector<128x256xf32>
    %cst_8 = arith.constant dense<0.000000e+00> : vector<16x256xf32>
    %57 = tpu.matmul %55, %56, %cst_8 {dimension_numbers = #tpu.dot_dimension_numbers<[1], [0], [0], [1], [0, 0, 1, 1], [], []>} : vector<16x128xf32>, vector<128x256xf32>, vector<16x256xf32> -> vector<16x256xf32>
    %c0_9 = arith.constant 0 : index
    %c0_10 = arith.constant 0 : index
    %58 = vector.load %arg5[%c0_9, %c0_10] : memref<1x256xf32, #tpu.memory_space<vmem>>, vector<1x256xf32>
    %59 = vector.broadcast %58 : vector<1x256xf32> to vector<16x256xf32>
    %60 = arith.addf %57, %59 : vector<16x256xf32>
    %cst_11 = arith.constant 0.000000e+00 : f32
    %61 = vector.broadcast %cst_11 : f32 to vector<16x256xf32>
    %62 = arith.maximumf %60, %61 : vector<16x256xf32>
    %c0_12 = arith.constant 0 : index
    %c0_13 = arith.constant 0 : index
    %63 = vector.load %arg6[%c0_12, %c0_13] : memref<256x256xf32, #tpu.memory_space<vmem>>, vector<256x256xf32>
    %cst_14 = arith.constant dense<0.000000e+00> : vector<16x256xf32>
    %64 = tpu.matmul %62, %63, %cst_14 {dimension_numbers = #tpu.dot_dimension_numbers<[1], [0], [0], [1], [0, 0, 1, 1], [], []>} : vector<16x256xf32>, vector<256x256xf32>, vector<16x256xf32> -> vector<16x256xf32>
    %c0_15 = arith.constant 0 : index
    %c0_16 = arith.constant 0 : index
    %65 = vector.load %arg7[%c0_15, %c0_16] : memref<1x256xf32, #tpu.memory_space<vmem>>, vector<1x256xf32>
    %66 = vector.broadcast %65 : vector<1x256xf32> to vector<16x256xf32>
    %67 = arith.addf %64, %66 : vector<16x256xf32>
    %cst_17 = arith.constant 0.000000e+00 : f32
    %68 = vector.broadcast %cst_17 : f32 to vector<16x256xf32>
    %69 = arith.maximumf %67, %68 : vector<16x256xf32>
    %c0_18 = arith.constant 0 : index
    %c0_19 = arith.constant 0 : index
    %70 = vector.load %arg8[%c0_18, %c0_19] : memref<256x128xf32, #tpu.memory_space<vmem>>, vector<256x128xf32>
    %cst_20 = arith.constant dense<0.000000e+00> : vector<16x128xf32>
    %71 = tpu.matmul %69, %70, %cst_20 {dimension_numbers = #tpu.dot_dimension_numbers<[1], [0], [0], [1], [0, 0, 1, 1], [], []>} : vector<16x256xf32>, vector<256x128xf32>, vector<16x128xf32> -> vector<16x128xf32>
    %c0_21 = arith.constant 0 : index
    %c0_22 = arith.constant 0 : index
    %72 = vector.load %arg9[%c0_21, %c0_22] : memref<1x128xf32, #tpu.memory_space<vmem>>, vector<1x128xf32>
    %73 = vector.broadcast %72 : vector<1x128xf32> to vector<16x128xf32>
    %74 = arith.addf %71, %73 : vector<16x128xf32>
    %cst_23 = arith.constant 0.000000e+00 : f32
    %75 = vector.broadcast %cst_23 : f32 to vector<16x128xf32>
    %76 = arith.maximumf %74, %75 : vector<16x128xf32>
    %c0_24 = arith.constant 0 : index
    %c0_25 = arith.constant 0 : index
    %77 = vector.load %arg10[%c0_24, %c0_25] : memref<128x128xf32, #tpu.memory_space<vmem>>, vector<128x128xf32>
    %cst_26 = arith.constant dense<0.000000e+00> : vector<16x128xf32>
    %78 = tpu.matmul %76, %77, %cst_26 {dimension_numbers = #tpu.dot_dimension_numbers<[1], [0], [0], [1], [0, 0, 1, 1], [], []>} : vector<16x128xf32>, vector<128x128xf32>, vector<16x128xf32> -> vector<16x128xf32>
    %c0_27 = arith.constant 0 : index
    %c0_28 = arith.constant 0 : index
    %79 = vector.load %arg11[%c0_27, %c0_28] : memref<1x128xf32, #tpu.memory_space<vmem>>, vector<1x128xf32>
    %80 = vector.broadcast %79 : vector<1x128xf32> to vector<16x128xf32>
    %81 = arith.addf %78, %80 : vector<16x128xf32>
    %c0_29 = arith.constant 0 : index
    %c0_30 = arith.constant 0 : index
    %82 = vector.load %arg12[%c0_29, %c0_30] : memref<16x128xf32, #tpu.memory_space<vmem>>, vector<16x128xf32>
    tpu.vector_store %arg12[%c0_29, %c0_30], %81 {strides = array<i32>} : memref<16x128xf32, #tpu.memory_space<vmem>>, vector<16x128xf32>,
    return
  }
  func.func @transform_0(%arg0: i32) -> (i32, i32) {
    %c0_i32 = arith.constant 0 : i32
    %c0_i32_0 = arith.constant 0 : i32
    return %arg0, %c0_i32 : i32, i32
  }
  func.func @transform_1(%arg0: i32) -> (i32, i32) {
    %c0_i32 = arith.constant 0 : i32
    %c0_i32_0 = arith.constant 0 : i32
    %c0_i32_1 = arith.constant 0 : i32
    return %c0_i32, %c0_i32_0 : i32, i32
  }
  func.func @transform_2(%arg0: i32) -> (i32, i32) {
    %c0_i32 = arith.constant 0 : i32
    %c0_i32_0 = arith.constant 0 : i32
    %c0_i32_1 = arith.constant 0 : i32
    return %c0_i32, %c0_i32_0 : i32, i32
  }
  func.func @transform_3(%arg0: i32) -> (i32, i32) {
    %c0_i32 = arith.constant 0 : i32
    %c0_i32_0 = arith.constant 0 : i32
    %c0_i32_1 = arith.constant 0 : i32
    return %c0_i32, %c0_i32_0 : i32, i32
  }
  func.func @transform_4(%arg0: i32) -> (i32, i32) {
    %c0_i32 = arith.constant 0 : i32
    %c0_i32_0 = arith.constant 0 : i32
    %c0_i32_1 = arith.constant 0 : i32
    return %c0_i32, %c0_i32_0 : i32, i32
  }
  func.func @transform_5(%arg0: i32) -> (i32, i32) {
    %c0_i32 = arith.constant 0 : i32
    %c0_i32_0 = arith.constant 0 : i32
    %c0_i32_1 = arith.constant 0 : i32
    return %c0_i32, %c0_i32_0 : i32, i32
  }
  func.func @transform_6(%arg0: i32) -> (i32, i32) {
    %c0_i32 = arith.constant 0 : i32
    %c0_i32_0 = arith.constant 0 : i32
    %c0_i32_1 = arith.constant 0 : i32
    return %c0_i32, %c0_i32_0 : i32, i32
  }
  func.func @transform_7(%arg0: i32) -> (i32, i32) {
    %c0_i32 = arith.constant 0 : i32
    %c0_i32_0 = arith.constant 0 : i32
    %c0_i32_1 = arith.constant 0 : i32
    return %c0_i32, %c0_i32_0 : i32, i32
  }
  func.func @transform_8(%arg0: i32) -> (i32, i32) {
    %c0_i32 = arith.constant 0 : i32
    %c0_i32_0 = arith.constant 0 : i32
    %c0_i32_1 = arith.constant 0 : i32
    return %c0_i32, %c0_i32_0 : i32, i32
  }
  func.func @transform_9(%arg0: i32) -> (i32, i32) {
    %c0_i32 = arith.constant 0 : i32
    %c0_i32_0 = arith.constant 0 : i32
    %c0_i32_1 = arith.constant 0 : i32
    return %c0_i32, %c0_i32_0 : i32, i32
  }
  func.func @transform_10(%arg0: i32) -> (i32, i32) {
    %c0_i32 = arith.constant 0 : i32
    %c0_i32_0 = arith.constant 0 : i32
    %c0_i32_1 = arith.constant 0 : i32
    return %c0_i32, %c0_i32_0 : i32, i32
  }
  func.func @transform_11(%arg0: i32) -> (i32, i32) {
    %c0_i32 = arith.constant 0 : i32
    %c0_i32_0 = arith.constant 0 : i32
    return %arg0, %c0_i32 : i32, i32
  }
}

</mosaic_0001>

<llo_original>
// kernel: tpu_custom_call.1
$region0: #{tpu_custom_call.1}
  #allocation0 [shape = 'u32[]', space=smem, size = 0x4, offset = 0x4, fixed_abs, tag = 'smem constant byte address 0x4 - core index']
  #allocation1 [shape = 'u32[72,128]{1,0:T(1,128)}', space=vmem, size = 0x9000, scoped, tag = 'internal scratch']
  %s0 = inlined_call_operand.vmem [shape: f32[48,8], index: 0, kind: input, shape index: {}]
  %s1 = inlined_call_operand.vmem [shape: f32[8,128], index: 1, kind: input, shape index: {}]
  %s2 = inlined_call_operand.vmem [shape: f32[1,128], index: 2, kind: input, shape index: {}]
  %s3 = inlined_call_operand.hbm [shape: f32[128,256], index: 3, kind: input, shape index: {}]
  %s4 = inlined_call_operand.vmem [shape: f32[1,256], index: 4, kind: input, shape index: {}]
  %s5 = inlined_call_operand.hbm [shape: f32[256,256], index: 5, kind: input, shape index: {}]
  %s6 = inlined_call_operand.vmem [shape: f32[1,256], index: 6, kind: input, shape index: {}]
  %s7 = inlined_call_operand.hbm [shape: f32[256,128], index: 7, kind: input, shape index: {}]
  %s8 = inlined_call_operand.vmem [shape: f32[1,128], index: 8, kind: input, shape index: {}]
  %s9 = inlined_call_operand.hbm [shape: f32[128,128], index: 9, kind: input, shape index: {}]
  %s10 = inlined_call_operand.vmem [shape: f32[1,128], index: 10, kind: input, shape index: {}]
  %s11 = inlined_call_operand.hbm [shape: f32[48,128], index: 11, kind: output, shape index: {}]
  %s12 = sld [smem:[#allocation0]]
  $region93: #{tpu_custom_call.1} parent=0
    _
  %s14 = ssub.s32 1, %s12
  %s15 = scalar_select 0, %s14, %s12
  $region1: #{tpu_custom_call.1} parent=0
    #allocation2 [shape = 'u8[131072]{0}', space=vmem, size = 0x20000, scoped, tag = 'input window, operand 3, single buffered']
    #allocation3 [shape = 's32[2]{0}', space=sflag, size = 0x8, scoped, tag = 'scoped memory for tpu_custom_call.1']
    #allocation4 [shape = 's32[2]{0}', space=sflag, size = 0x8, scoped, tag = 'scoped memory for tpu_custom_call.1']
    #allocation5 [shape = 'u8[262144]{0}', space=vmem, size = 0x40000, scoped, tag = 'input window, operand 5, single buffered']
    #allocation6 [shape = 's32[1]{0}', space=sflag, size = 0x4, scoped, tag = 'scoped memory for tpu_custom_call.1']
    #allocation7 [shape = 'u8[131072]{0}', space=vmem, size = 0x20000, scoped, tag = 'input window, operand 7, single buffered']
    #allocation8 [shape = 'u8[65536]{0}', space=vmem, size = 0x10000, scoped, tag = 'input window, operand 9, single buffered']
    #allocation9 [shape = 's32[1]{0}', space=sflag, size = 0x4, scoped, tag = 'scoped memory for tpu_custom_call.1']
    #allocation10 [shape = 'u8[16384]{0}', space=vmem, size = 0x4000, scoped, tag = 'output window, operand 0']
    %16 = vsyncpa [#allocation3], 0
    %17 = vsyncpa [#allocation6], 0
    %18 = vsyncpa [#allocation9], 0
    %19 = vsyncpa [#allocation4], 0
    %s20 = scalar_lea.sflag [#allocation4], 1
    %21 = vsyncpa %s20, 0
    loop: start=0, step=1, limit=5
    $region2: #{tpu_custom_call.1} parent=1 // loop_pre_header
      _
    $region3: #{tpu_custom_call.1} parent=1 // loop_header
      %s23 = sphi 0, %s27
      %p24 = scmp.ge.s32.totalorder %s23, 5
      %s33 = sphi 0, %s35
      %s36 = sphi 0, %s33
      %s37 = sphi 0, %s36
      %s53 = sphi 0, %s37
      %s57 = sphi 0, %s57
      %s59 = sphi 0, %s57
      %s60 = sphi 0, %s59
      %s74 = sphi 0, %s60
      %s78 = sphi 0, %s78
      %s80 = sphi 0, %s78
      %s81 = sphi 0, %s80
      %s95 = sphi 0, %s81
      %s99 = sphi 0, %s99
      %s101 = sphi 0, %s99
      %s102 = sphi 0, %s101
      %s116 = sphi 0, %s102
      %s120 = sphi 0, %s120
      %s122 = sphi 0, %s120
      %s123 = sphi 0, %s122
      %s137 = sphi 0, %s123
      %s141 = sphi 0, %s141
      %s143 = sphi 0, %s141
      %s144 = sphi 0, %s143
      %s158 = sphi 0, %s144
      %s162 = sphi 0, %s162
      %s164 = sphi 0, %s162
      %s165 = sphi 0, %s164
      %s179 = sphi 0, %s165
      %s183 = sphi 0, %s183
      %s185 = sphi 0, %s183
      %s186 = sphi 0, %s185
      %s200 = sphi 0, %s186
      %s204 = sphi 0, %s204
      %s206 = sphi 0, %s204
      %s207 = sphi 0, %s206
      %s221 = sphi 0, %s207
      %s225 = sphi 0, %s225
      %s227 = sphi 0, %s225
      %s228 = sphi 0, %s227
      %s242 = sphi 0, %s228
      %s246 = sphi 0, %s246
      %s248 = sphi 0, %s246
      %s249 = sphi 0, %s248
      %s263 = sphi 0, %s249
      %s269 = sphi 0, %s271
      %s272 = sphi 0, %s269
      %s273 = sphi 0, %s272
      %s289 = sphi 0, %s273
    $region4: #{tpu_custom_call.1} parent=1 // loop_header_branch
      %26 = sbr.rel (%p24) target = $region8
    $region5: #{tpu_custom_call.1} parent=1 // loop_body
      %s28 = ssub.s32 %s23, 1
      %s29 = ssub.s32 %s23, 2
      %s30 = sadd.s32 %s23, 1
      %s31 = ssub.s32 %s23, %s30
      %p32 = scmp.eq.s32.totalorder %s31, 0
      %s34 = sadd.s32 %s33, 1
      %s35 = scalar_select %p32, %s33, %s34
      %p38 = pneg %p32
      %p39 = scmp.eq.s32.totalorder %s23, 2
      %p40 = por %p38, %p39
      %p41 = scmp.ne.s32.totalorder %s33, %s36
      %p42 = scmp.eq.s32.totalorder %s23, 0
      %p43 = por %p41, %p42
      %p44 = scmp.ne.s32.totalorder %s33, %s36
      %p45 = scmp.eq.s32.totalorder %s28, 2
      %p46 = por %p44, %p45
      %p47 = scmp.ne.s32.totalorder %s36, %s37
      %p48 = scmp.eq.s32.totalorder %s28, 0
      %p49 = por %p47, %p48
      %p50 = scmp.ne.s32.totalorder %s36, %s37
      %p51 = scmp.eq.s32.totalorder %s29, 2
      %p52 = por %p50, %p51
      %p54 = scmp.ne.s32.totalorder %s37, %s53
      %p55 = scmp.eq.s32.totalorder %s29, 0
      %p56 = por %p54, %p55
      %s58 = sadd.s32 %s57, 1
      %p61 = scmp.eq.s32.totalorder %s23, 2
      %p62 = scmp.ne.s32.totalorder %s57, %s59
      %p63 = scmp.eq.s32.totalorder %s23, 0
      %p64 = por %p62, %p63
      %p65 = scmp.ne.s32.totalorder %s57, %s59
      %p66 = scmp.eq.s32.totalorder %s28, 2
      %p67 = por %p65, %p66
      %p68 = scmp.ne.s32.totalorder %s59, %s60
      %p69 = scmp.eq.s32.totalorder %s28, 0
      %p70 = por %p68, %p69
      %p71 = scmp.ne.s32.totalorder %s59, %s60
      %p72 = scmp.eq.s32.totalorder %s29, 2
      %p73 = por %p71, %p72
      %p75 = scmp.ne.s32.totalorder %s60, %s74
      %p76 = scmp.eq.s32.totalorder %s29, 0
      %p77 = por %p75, %p76
      %s79 = sadd.s32 %s78, 1
      %p82 = scmp.eq.s32.totalorder %s23, 2
      %p83 = scmp.ne.s32.totalorder %s78, %s80
      %p84 = scmp.eq.s32.totalorder %s23, 0
      %p85 = por %p83, %p84
      %p86 = scmp.ne.s32.totalorder %s78, %s80
      %p87 = scmp.eq.s32.totalorder %s28, 2
      %p88 = por %p86, %p87
      %p89 = scmp.ne.s32.totalorder %s80, %s81
      %p90 = scmp.eq.s32.totalorder %s28, 0
      %p91 = por %p89, %p90
      %p92 = scmp.ne.s32.totalorder %s80, %s81
      %p93 = scmp.eq.s32.totalorder %s29, 2
      %p94 = por %p92, %p93
      %p96 = scmp.ne.s32.totalorder %s81, %s95
      %p97 = scmp.eq.s32.totalorder %s29, 0
      %p98 = por %p96, %p97
      %s100 = sadd.s32 %s99, 1
      %p103 = scmp.eq.s32.totalorder %s23, 2
      %p104 = scmp.ne.s32.totalorder %s99, %s101
      %p105 = scmp.eq.s32.totalorder %s23, 0
      %p106 = por %p104, %p105
      %p107 = scmp.ne.s32.totalorder %s99, %s101
      %p108 = scmp.eq.s32.totalorder %s28, 2
      %p109 = por %p107, %p108
      %p110 = scmp.ne.s32.totalorder %s101, %s102
      %p111 = scmp.eq.s32.totalorder %s28, 0
      %p112 = por %p110, %p111
      %p113 = scmp.ne.s32.totalorder %s101, %s102
      %p114 = scmp.eq.s32.totalorder %s29, 2
      %p115 = por %p113, %p114
      %p117 = scmp.ne.s32.totalorder %s102, %s116
      %p118 = scmp.eq.s32.totalorder %s29, 0
      %p119 = por %p117, %p118
      %s121 = sadd.s32 %s120, 1
      %p124 = scmp.eq.s32.totalorder %s23, 2
      %p125 = scmp.ne.s32.totalorder %s120, %s122
      %p126 = scmp.eq.s32.totalorder %s23, 0
      %p127 = por %p125, %p126
      %p128 = scmp.ne.s32.totalorder %s120, %s122
      %p129 = scmp.eq.s32.totalorder %s28, 2
      %p130 = por %p128, %p129
      %p131 = scmp.ne.s32.totalorder %s122, %s123
      %p132 = scmp.eq.s32.totalorder %s28, 0
      %p133 = por %p131, %p132
      %p134 = scmp.ne.s32.totalorder %s122, %s123
      %p135 = scmp.eq.s32.totalorder %s29, 2
      %p136 = por %p134, %p135
      %p138 = scmp.ne.s32.totalorder %s123, %s137
      %p139 = scmp.eq.s32.totalorder %s29, 0
      %p140 = por %p138, %p139
      %s142 = sadd.s32 %s141, 1
      %p145 = scmp.eq.s32.totalorder %s23, 2
      %p146 = scmp.ne.s32.totalorder %s141, %s143
      %p147 = scmp.eq.s32.totalorder %s23, 0
      %p148 = por %p146, %p147
      %p149 = scmp.ne.s32.totalorder %s141, %s143
      %p150 = scmp.eq.s32.totalorder %s28, 2
      %p151 = por %p149, %p150
      %p152 = scmp.ne.s32.totalorder %s143, %s144
      %p153 = scmp.eq.s32.totalorder %s28, 0
      %p154 = por %p152, %p153
      %p155 = scmp.ne.s32.totalorder %s143, %s144
      %p156 = scmp.eq.s32.totalorder %s29, 2
      %p157 = por %p155, %p156
      %p159 = scmp.ne.s32.totalorder %s144, %s158
      %p160 = scmp.eq.s32.totalorder %s29, 0
      %p161 = por %p159, %p160
      %s163 = sadd.s32 %s162, 1
      %p166 = scmp.eq.s32.totalorder %s23, 2
      %p167 = scmp.ne.s32.totalorder %s162, %s164
      %p168 = scmp.eq.s32.totalorder %s23, 0
      %p169 = por %p167, %p168
      %p170 = scmp.ne.s32.totalorder %s162, %s164
      %p171 = scmp.eq.s32.totalorder %s28, 2
      %p172 = por %p170, %p171
      %p173 = scmp.ne.s32.totalorder %s164, %s165
      %p174 = scmp.eq.s32.totalorder %s28, 0
      %p175 = por %p173, %p174
      %p176 = scmp.ne.s32.totalorder %s164, %s165
      %p177 = scmp.eq.s32.totalorder %s29, 2
      %p178 = por %p176, %p177
      %p180 = scmp.ne.s32.totalorder %s165, %s179
      %p181 = scmp.eq.s32.totalorder %s29, 0
      %p182 = por %p180, %p181
      %s184 = sadd.s32 %s183, 1
      %p187 = scmp.eq.s32.totalorder %s23, 2
      %p188 = scmp.ne.s32.totalorder %s183, %s185
      %p189 = scmp.eq.s32.totalorder %s23, 0
      %p190 = por %p188, %p189
      %p191 = scmp.ne.s32.totalorder %s183, %s185
      %p192 = scmp.eq.s32.totalorder %s28, 2
      %p193 = por %p191, %p192
      %p194 = scmp.ne.s32.totalorder %s185, %s186
      %p195 = scmp.eq.s32.totalorder %s28, 0
      %p196 = por %p194, %p195
      %p197 = scmp.ne.s32.totalorder %s185, %s186
      %p198 = scmp.eq.s32.totalorder %s29, 2
      %p199 = por %p197, %p198
      %p201 = scmp.ne.s32.totalorder %s186, %s200
      %p202 = scmp.eq.s32.totalorder %s29, 0
      %p203 = por %p201, %p202
      %s205 = sadd.s32 %s204, 1
      %p208 = scmp.eq.s32.totalorder %s23, 2
      %p209 = scmp.ne.s32.totalorder %s204, %s206
      %p210 = scmp.eq.s32.totalorder %s23, 0
      %p211 = por %p209, %p210
      %p212 = scmp.ne.s32.totalorder %s204, %s206
      %p213 = scmp.eq.s32.totalorder %s28, 2
      %p214 = por %p212, %p213
      %p215 = scmp.ne.s32.totalorder %s206, %s207
      %p216 = scmp.eq.s32.totalorder %s28, 0
      %p217 = por %p215, %p216
      %p218 = scmp.ne.s32.totalorder %s206, %s207
      %p219 = scmp.eq.s32.totalorder %s29, 2
      %p220 = por %p218, %p219
      %p222 = scmp.ne.s32.totalorder %s207, %s221
      %p223 = scmp.eq.s32.totalorder %s29, 0
      %p224 = por %p222, %p223
      %s226 = sadd.s32 %s225, 1
      %p229 = scmp.eq.s32.totalorder %s23, 2
      %p230 = scmp.ne.s32.totalorder %s225, %s227
      %p231 = scmp.eq.s32.totalorder %s23, 0
      %p232 = por %p230, %p231
      %p233 = scmp.ne.s32.totalorder %s225, %s227
      %p234 = scmp.eq.s32.totalorder %s28, 2
      %p235 = por %p233, %p234
      %p236 = scmp.ne.s32.totalorder %s227, %s228
      %p237 = scmp.eq.s32.totalorder %s28, 0
      %p238 = por %p236, %p237
      %p239 = scmp.ne.s32.totalorder %s227, %s228
      %p240 = scmp.eq.s32.totalorder %s29, 2
      %p241 = por %p239, %p240
      %p243 = scmp.ne.s32.totalorder %s228, %s242
      %p244 = scmp.eq.s32.totalorder %s29, 0
      %p245 = por %p243, %p244
      %s247 = sadd.s32 %s246, 1
      %p250 = scmp.eq.s32.totalorder %s23, 2
      %p251 = scmp.ne.s32.totalorder %s246, %s248
      %p252 = scmp.eq.s32.totalorder %s23, 0
      %p253 = por %p251, %p252
      %p254 = scmp.ne.s32.totalorder %s246, %s248
      %p255 = scmp.eq.s32.totalorder %s28, 2
      %p256 = por %p254, %p255
      %p257 = scmp.ne.s32.totalorder %s248, %s249
      %p258 = scmp.eq.s32.totalorder %s28, 0
      %p259 = por %p257, %p258
      %p260 = scmp.ne.s32.totalorder %s248, %s249
      %p261 = scmp.eq.s32.totalorder %s29, 2
      %p262 = por %p260, %p261
      %p264 = scmp.ne.s32.totalorder %s249, %s263
      %p265 = scmp.eq.s32.totalorder %s29, 0
      %p266 = por %p264, %p265
      %s267 = ssub.s32 %s23, %s30
      %p268 = scmp.eq.s32.totalorder %s267, 0
      %s270 = sadd.s32 %s269, 1
      %s271 = scalar_select %p268, %s269, %s270
      %p274 = pneg %p268
      %p275 = scmp.eq.s32.totalorder %s23, 2
      %p276 = por %p274, %p275
      %p277 = scmp.ne.s32.totalorder %s269, %s272
      %p278 = scmp.eq.s32.totalorder %s23, 0
      %p279 = por %p277, %p278
      %p280 = scmp.ne.s32.totalorder %s269, %s272
      %p281 = scmp.eq.s32.totalorder %s28, 2
      %p282 = por %p280, %p281
      %p283 = scmp.ne.s32.totalorder %s272, %s273
      %p284 = scmp.eq.s32.totalorder %s28, 0
      %p285 = por %p283, %p284
      %p286 = scmp.ne.s32.totalorder %s272, %s273
      %p287 = scmp.eq.s32.totalorder %s29, 2
      %p288 = por %p286, %p287
      %p290 = scmp.ne.s32.totalorder %s273, %s289
      %p291 = scmp.eq.s32.totalorder %s29, 0
      %p292 = por %p290, %p291
      %p293 = scmp.le.s32.totalorder 1, %s23
      %p294 = scmp.lt.s32.totalorder %s23, 4
      %p295 = pnand %p293, %p294
      %p296 = pneg %p295
      // Predicated region
      $region9: #{tpu_custom_call.1} parent=5 // pred_check
        _
      $region10: #{tpu_custom_call.1} parent=5 // pred_check_branch
        %298 = sbr.rel (%p295) target = $region12
      $region11: #{tpu_custom_call.1} parent=5 // pred_region
        %s299 = ssub.s32 %s23, 1
        // Predicated region
        $region13: #{tpu_custom_call.1} parent=11 // pred_check
          %p300 = pneg %p70
        $region14: #{tpu_custom_call.1} parent=11 // pred_check_branch
          %302 = sbr.rel (%p300) target = $region16
        $region15: #{tpu_custom_call.1} parent=11 // pred_region
          _
        $region16: #{tpu_custom_call.1} parent=11 // pred_fallthru
          _
        // Predicated region
        $region17: #{tpu_custom_call.1} parent=11 // pred_check
          %p303 = pneg %p91
        $region18: #{tpu_custom_call.1} parent=11 // pred_check_branch
          %305 = sbr.rel (%p303) target = $region20
        $region19: #{tpu_custom_call.1} parent=11 // pred_region
          _
        $region20: #{tpu_custom_call.1} parent=11 // pred_fallthru
          _
        // Predicated region
        $region21: #{tpu_custom_call.1} parent=11 // pred_check
          %p306 = pneg %p112
        $region22: #{tpu_custom_call.1} parent=11 // pred_check_branch
          %308 = sbr.rel (%p306) target = $region24
        $region23: #{tpu_custom_call.1} parent=11 // pred_region
          %310 = vsyncadd [#allocation3], 0
          %s311 = sshll.u32 %s3, 4
          %s312 = int_to_ptr.hbm [resolvable:$true] %s311
          %s313 = sshll.u32 [#allocation2], 4
          %s314 = int_to_ptr.vmem [resolvable:$true] %s313
          %319 = dma.hbm_to_vmem [thread:$0]  %s312, 4096, %s314, [#allocation3], 256, 256, 16
        $region24: #{tpu_custom_call.1} parent=11 // pred_fallthru
          _
        // Predicated region
        $region25: #{tpu_custom_call.1} parent=11 // pred_check
          %p320 = pneg %p133
        $region26: #{tpu_custom_call.1} parent=11 // pred_check_branch
          %322 = sbr.rel (%p320) target = $region28
        $region27: #{tpu_custom_call.1} parent=11 // pred_region
          _
        $region28: #{tpu_custom_call.1} parent=11 // pred_fallthru
          _
        // Predicated region
        $region29: #{tpu_custom_call.1} parent=11 // pred_check
          %p323 = pneg %p154
        $region30: #{tpu_custom_call.1} parent=11 // pred_check_branch
          %325 = sbr.rel (%p323) target = $region32
        $region31: #{tpu_custom_call.1} parent=11 // pred_region
          %327 = vsyncadd [#allocation6], 0
          %s328 = sshll.u32 %s5, 4
          %s329 = int_to_ptr.hbm [resolvable:$true] %s328
          %s330 = sshll.u32 [#allocation5], 4
          %s331 = int_to_ptr.vmem [resolvable:$true] %s330
          %336 = dma.hbm_to_vmem [thread:$0]  %s329, 8192, %s331, [#allocation6], 256, 256, 16
        $region32: #{tpu_custom_call.1} parent=11 // pred_fallthru
          _
        // Predicated region
        $region33: #{tpu_custom_call.1} parent=11 // pred_check
          %p337 = pneg %p175
        $region34: #{tpu_custom_call.1} parent=11 // pred_check_branch
          %339 = sbr.rel (%p337) target = $region36
        $region35: #{tpu_custom_call.1} parent=11 // pred_region
          _
        $region36: #{tpu_custom_call.1} parent=11 // pred_fallthru
          _
        // Predicated region
        $region37: #{tpu_custom_call.1} parent=11 // pred_check
          %p340 = pneg %p196
        $region38: #{tpu_custom_call.1} parent=11 // pred_check_branch
          %342 = sbr.rel (%p340) target = $region40
        $region39: #{tpu_custom_call.1} parent=11 // pred_region
          %344 = vsyncadd [#allocation6], 0
          %s345 = sshll.u32 %s7, 4
          %s346 = int_to_ptr.hbm [resolvable:$true] %s345
          %s347 = sshll.u32 [#allocation7], 4
          %s348 = int_to_ptr.vmem [resolvable:$true] %s347
          %353 = dma.hbm_to_vmem [thread:$0]  %s346, 4096, %s348, [#allocation6], 128, 128, 8
        $region40: #{tpu_custom_call.1} parent=11 // pred_fallthru
          _
        // Predicated region
        $region41: #{tpu_custom_call.1} parent=11 // pred_check
          %p354 = pneg %p217
        $region42: #{tpu_custom_call.1} parent=11 // pred_check_branch
          %356 = sbr.rel (%p354) target = $region44
        $region43: #{tpu_custom_call.1} parent=11 // pred_region
          _
        $region44: #{tpu_custom_call.1} parent=11 // pred_fallthru
          _
        // Predicated region
        $region45: #{tpu_custom_call.1} parent=11 // pred_check
          %p357 = pneg %p238
        $region46: #{tpu_custom_call.1} parent=11 // pred_check_branch
          %359 = sbr.rel (%p357) target = $region48
        $region47: #{tpu_custom_call.1} parent=11 // pred_region
          %361 = vsyncadd [#allocation9], 0
          %s362 = sshll.u32 %s9, 4
          %s363 = int_to_ptr.hbm [resolvable:$true] %s362
          %s364 = sshll.u32 [#allocation8], 4
          %s365 = int_to_ptr.vmem [resolvable:$true] %s364
          %370 = dma.hbm_to_vmem [thread:$0]  %s363, 2048, %s365, [#allocation9], 128, 128, 8
        $region48: #{tpu_custom_call.1} parent=11 // pred_fallthru
          _
        // Predicated region
        $region49: #{tpu_custom_call.1} parent=11 // pred_check
          %p371 = pneg %p259
        $region50: #{tpu_custom_call.1} parent=11 // pred_check_branch
          %373 = sbr.rel (%p371) target = $region52
        $region51: #{tpu_custom_call.1} parent=11 // pred_region
          _
        $region52: #{tpu_custom_call.1} parent=11 // pred_fallthru
          _
      $region12: #{tpu_custom_call.1} parent=5 // pred_fallthru
        _
      %p374 = scmp.lt.s32.totalorder %s23, 3
      // Predicated region
      $region53: #{tpu_custom_call.1} parent=5 // pred_check
        %p375 = pneg %p374
      $region54: #{tpu_custom_call.1} parent=5 // pred_check_branch
        %377 = sbr.rel (%p375) target = $region56
      $region55: #{tpu_custom_call.1} parent=5 // pred_region
        // Predicated region
        $region57: #{tpu_custom_call.1} parent=55 // pred_check
          %p378 = pneg %p43
        $region58: #{tpu_custom_call.1} parent=55 // pred_check_branch
          %380 = sbr.rel (%p378) target = $region60
        $region59: #{tpu_custom_call.1} parent=55 // pred_region
          %s381 = smul.u32 2, %s23
          %p382 = scmp.lt.s32.totalorder %s381, 5
          %s383 = scalar_select %p382, %s381, 5
          %s384 = smul.addr %s383, 8
          %s385 = scalar_lea.vmem %s0, %s384
          %s386 = smul.u32 2, %s23
        $region60: #{tpu_custom_call.1} parent=55 // pred_fallthru
          _
      $region56: #{tpu_custom_call.1} parent=5 // pred_fallthru
        _
      %p387 = scmp.le.s32.totalorder 1, %s23
      %p388 = scmp.lt.s32.totalorder %s23, 4
      %p389 = pnand %p387, %p388
      %p390 = pneg %p389
      // Predicated region
      $region61: #{tpu_custom_call.1} parent=5 // pred_check
        _
      $region62: #{tpu_custom_call.1} parent=5 // pred_check_branch
        %392 = sbr.rel (%p389) target = $region64
      $region63: #{tpu_custom_call.1} parent=5 // pred_region
        %s393 = ssub.s32 %s23, 1
        // Predicated region
        $region65: #{tpu_custom_call.1} parent=63 // pred_check
          %p394 = pneg %p112
        $region66: #{tpu_custom_call.1} parent=63 // pred_check_branch
          %396 = sbr.rel (%p394) target = $region68
        $region67: #{tpu_custom_call.1} parent=63 // pred_region
          %398 = dma.done [#allocation3], 4096
        $region68: #{tpu_custom_call.1} parent=63 // pred_fallthru
          _
        // Predicated region
        $region69: #{tpu_custom_call.1} parent=63 // pred_check
          %p399 = pneg %p154
        $region70: #{tpu_custom_call.1} parent=63 // pred_check_branch
          %401 = sbr.rel (%p399) target = $region72
        $region71: #{tpu_custom_call.1} parent=63 // pred_region
          %403 = dma.done [#allocation6], 8192
        $region72: #{tpu_custom_call.1} parent=63 // pred_fallthru
          _
        // Predicated region
        $region73: #{tpu_custom_call.1} parent=63 // pred_check
          %p404 = pneg %p196
        $region74: #{tpu_custom_call.1} parent=63 // pred_check_branch
          %406 = sbr.rel (%p404) target = $region76
        $region75: #{tpu_custom_call.1} parent=63 // pred_region
          %408 = dma.done [#allocation6], 4096
        $region76: #{tpu_custom_call.1} parent=63 // pred_fallthru
          _
        // Predicated region
        $region77: #{tpu_custom_call.1} parent=63 // pred_check
          %p409 = pneg %p238
        $region78: #{tpu_custom_call.1} parent=63 // pred_check_branch
          %411 = sbr.rel (%p409) target = $region80
        $region79: #{tpu_custom_call.1} parent=63 // pred_region
          %413 = dma.done [#allocation9], 2048
        $region80: #{tpu_custom_call.1} parent=63 // pred_fallthru
          _
        %s414 = smul.u32 2, %s28
        %p415 = scmp.lt.s32.totalorder %s414, 5
        %s416 = scalar_select %p415, %s414, 5
        %s417 = smul.addr %s416, 8
        %s418 = scalar_lea.vmem %s0, %s417
        %p419 = pneg %p49
        %p420 = pneg %p46
        %p421 = pneg %p70
        %p422 = pneg %p67
        %p423 = pneg %p91
        %p424 = pneg %p88
        %p425 = pneg %p112
        %p426 = pneg %p109
        %p427 = pneg %p133
        %p428 = pneg %p130
        %p429 = pneg %p154
        %p430 = pneg %p151
        %p431 = pneg %p175
        %p432 = pneg %p172
        %p433 = pneg %p196
        %p434 = pneg %p193
        %p435 = pneg %p217
        %p436 = pneg %p214
        %p437 = pneg %p238
        %p438 = pneg %p235
        %p439 = pneg %p259
        %p440 = pneg %p256
        %p441 = pneg %p285
        %p442 = pneg %p282
        %s443 = sand.u32 %s272, 1
        %s444 = scalar_lea.sflag [#allocation4], %s443
        %s445 = sand.u32 %s272, 1
        %s446 = smul.addr %s445, 16
        %s447 = scalar_lea.vmem [#allocation10], %s446
        %s448 = smul.u32 2, %s28
        %p449 = scmp.lt.s32.totalorder %s448, 5
        %s450 = scalar_select %p449, %s448, 5
        %s451 = smul.addr %s450, 8
        %s452 = scalar_lea.vmem %s0, %s451
        %s453 = smul.u32 2, %s28
        %s454 = smul.u32 2, %s28
        %v455 = vld [vmem:[%s452] sm:$0xff]
        %v456 = vld [vmem:[%s452 + $0x8] sm:$0xff]
        %v457 = vld [vmem:[%s1] sm:$0xff]
        %459 = vset.pattern.permute.xlu0 0
        %460 = vperm.xlu0 %459, %v455
        %v461 = vpop.permute.xlu0 %460
        %464 = vset.pattern.permute.xlu0 0
        %465 = vperm.xlu0 %464, %v456
        %v466 = vpop.permute.xlu0 %465
        %v468 = vperm.slane %v457, 0
        %v469 = vmul.f32 %v461, %v468
        %v470 = vmul.f32 %v466, %v468
        %v471 = vadd.f32 %v469, 0.0
        %v472 = vadd.f32 %v470, 0.0
        %473 = vset.pattern.permute.xlu0 1
        %474 = vperm.xlu0 %473, %v455
        %v475 = vpop.permute.xlu0 %474
        %477 = vset.pattern.permute.xlu0 1
        %478 = vperm.xlu0 %477, %v456
        %v479 = vpop.permute.xlu0 %478
        %v481 = vperm.slane %v457, 1
        %v482 = vmul.f32 %v475, %v481
        %v483 = vmul.f32 %v479, %v481
        %v484 = vadd.f32 %v471, %v482
        %v485 = vadd.f32 %v472, %v483
        %486 = vset.pattern.permute.xlu0 2
        %487 = vperm.xlu0 %486, %v455
        %v488 = vpop.permute.xlu0 %487
        %490 = vset.pattern.permute.xlu0 2
        %491 = vperm.xlu0 %490, %v456
        %v492 = vpop.permute.xlu0 %491
        %v494 = vperm.slane %v457, 2
        %v495 = vmul.f32 %v488, %v494
        %v496 = vmul.f32 %v492, %v494
        %v497 = vadd.f32 %v484, %v495
        %v498 = vadd.f32 %v485, %v496
        %499 = vset.pattern.permute.xlu0 3
        %500 = vperm.xlu0 %499, %v455
        %v501 = vpop.permute.xlu0 %500
        %503 = vset.pattern.permute.xlu0 3
        %504 = vperm.xlu0 %503, %v456
        %v505 = vpop.permute.xlu0 %504
        %v507 = vperm.slane %v457, 3
        %v508 = vmul.f32 %v501, %v507
        %v509 = vmul.f32 %v505, %v507
        %v510 = vadd.f32 %v497, %v508
        %v511 = vadd.f32 %v498, %v509
        %512 = vset.pattern.permute.xlu0 4
        %513 = vperm.xlu0 %512, %v455
        %v514 = vpop.permute.xlu0 %513
        %516 = vset.pattern.permute.xlu0 4
        %517 = vperm.xlu0 %516, %v456
        %v518 = vpop.permute.xlu0 %517
        %v520 = vperm.slane %v457, 4
        %v521 = vmul.f32 %v514, %v520
        %v522 = vmul.f32 %v518, %v520
        %v523 = vadd.f32 %v510, %v521
        %v524 = vadd.f32 %v511, %v522
        %525 = vset.pattern.permute.xlu0 5
        %526 = vperm.xlu0 %525, %v455
        %v527 = vpop.permute.xlu0 %526
        %529 = vset.pattern.permute.xlu0 5
        %530 = vperm.xlu0 %529, %v456
        %v531 = vpop.permute.xlu0 %530
        %v533 = vperm.slane %v457, 5
        %v534 = vmul.f32 %v527, %v533
        %v535 = vmul.f32 %v531, %v533
        %v536 = vadd.f32 %v523, %v534
        %v537 = vadd.f32 %v524, %v535
        %538 = vset.pattern.permute.xlu0 6
        %539 = vperm.xlu0 %538, %v455
        %v540 = vpop.permute.xlu0 %539
        %542 = vset.pattern.permute.xlu0 6
        %543 = vperm.xlu0 %542, %v456
        %v544 = vpop.permute.xlu0 %543
        %v546 = vperm.slane %v457, 6
        %v547 = vmul.f32 %v540, %v546
        %v548 = vmul.f32 %v544, %v546
        %v549 = vadd.f32 %v536, %v547
        %v550 = vadd.f32 %v537, %v548
        %551 = vset.pattern.permute.xlu0 7
        %552 = vperm.xlu0 %551, %v455
        %v553 = vpop.permute.xlu0 %552
        %555 = vset.pattern.permute.xlu0 7
        %556 = vperm.xlu0 %555, %v456
        %v557 = vpop.permute.xlu0 %556
        %v559 = vperm.slane %v457, 7
        %v560 = vmul.f32 %v553, %v559
        %v561 = vmul.f32 %v557, %v559
        %v562 = vadd.f32 %v549, %v560
        %v563 = vadd.f32 %v550, %v561
        %v564 = vld [vmem:[%s2] sm:$0x1]
        %v566 = vperm.slane %v564, 0
        %v568 = vadd.f32 %v562, %v566
        %v569 = vadd.f32 %v563, %v566
        %v570 = vmax.f32 %v568, 0.0
        %v571 = vmax.f32 %v569, 0.0
        %v572 = vld [vmem:[#allocation2] sm:$0xff]
        %v573 = vld [vmem:[#allocation2 + $0x8] sm:$0xff]
        %v574 = vld [vmem:[#allocation2 + $0x10] sm:$0xff]
        %v575 = vld [vmem:[#allocation2 + $0x18] sm:$0xff]
        %v576 = vld [vmem:[#allocation2 + $0x20] sm:$0xff]
        %v577 = vld [vmem:[#allocation2 + $0x28] sm:$0xff]
        %v578 = vld [vmem:[#allocation2 + $0x30] sm:$0xff]
        %v579 = vld [vmem:[#allocation2 + $0x38] sm:$0xff]
        %v580 = vld [vmem:[#allocation2 + $0x40] sm:$0xff]
        %v581 = vld [vmem:[#allocation2 + $0x48] sm:$0xff]
        %v582 = vld [vmem:[#allocation2 + $0x50] sm:$0xff]
        %v583 = vld [vmem:[#allocation2 + $0x58] sm:$0xff]
        %v584 = vld [vmem:[#allocation2 + $0x60] sm:$0xff]
        %v585 = vld [vmem:[#allocation2 + $0x68] sm:$0xff]
        %v586 = vld [vmem:[#allocation2 + $0x70] sm:$0xff]
        %v587 = vld [vmem:[#allocation2 + $0x78] sm:$0xff]
        %v588 = vld [vmem:[#allocation2 + $0x80] sm:$0xff]
        %v589 = vld [vmem:[#allocation2 + $0x88] sm:$0xff]
        %v590 = vld [vmem:[#allocation2 + $0x90] sm:$0xff]
        %v591 = vld [vmem:[#allocation2 + $0x98] sm:$0xff]
        %v592 = vld [vmem:[#allocation2 + $0xa0] sm:$0xff]
        %v593 = vld [vmem:[#allocation2 + $0xa8] sm:$0xff]
        %v594 = vld [vmem:[#allocation2 + $0xb0] sm:$0xff]
        %v595 = vld [vmem:[#allocation2 + $0xb8] sm:$0xff]
        %v596 = vld [vmem:[#allocation2 + $0xc0] sm:$0xff]
        %v597 = vld [vmem:[#allocation2 + $0xc8] sm:$0xff]
        %v598 = vld [vmem:[#allocation2 + $0xd0] sm:$0xff]
        %v599 = vld [vmem:[#allocation2 + $0xd8] sm:$0xff]
        %v600 = vld [vmem:[#allocation2 + $0xe0] sm:$0xff]
        %v601 = vld [vmem:[#allocation2 + $0xe8] sm:$0xff]
        %v602 = vld [vmem:[#allocation2 + $0xf0] sm:$0xff]
        %v603 = vld [vmem:[#allocation2 + $0xf8] sm:$0xff]
        %v604 = vld [vmem:[%s4] sm:$0x3]
        %v606 = vperm.slane %v604, 0
        %v607 = vperm.slane %v604, 1
        %610 = vmatpush.msra.mxu0 %v602
        %611 = vmatpush.msra.mxu0 %v600
        %612 = vmatpush.msra.mxu0 %v598
        %613 = vmatpush.msra.mxu0 %v596
        %614 = vmatpush.msra.mxu0 %v594
        %615 = vmatpush.msra.mxu0 %v592
        %616 = vmatpush.msra.mxu0 %v590
        %617 = vmatpush.msra.mxu0 %v588
        %618 = vmatpush.msra.mxu0 %v586
        %619 = vmatpush.msra.mxu0 %v584
        %620 = vmatpush.msra.mxu0 %v582
        %621 = vmatpush.msra.mxu0 %v580
        %622 = vmatpush.msra.mxu0 %v578
        %623 = vmatpush.msra.mxu0 %v576
        %624 = vmatpush.msra.mxu0 %v574
        %625 = vmatpush.msra.mxu0 %v572
        %626 = vmatmul.f32.gmra.mxu0 %v570
        %v627 = vpop.f32.mrf.mxu0
        %v628 = vadd.f32 %v606, %v627
        %629 = vmatmul.f32.gmra.mxu0 %v571
        %v630 = vpop.f32.mrf.mxu0
        %v631 = vadd.f32 %v606, %v630
        %632 = vdwg.mxu0
        %633 = vmatpush.msra.mxu0 %v603
        %634 = vmatpush.msra.mxu0 %v601
        %635 = vmatpush.msra.mxu0 %v599
        %636 = vmatpush.msra.mxu0 %v597
        %637 = vmatpush.msra.mxu0 %v595
        %638 = vmatpush.msra.mxu0 %v593
        %639 = vmatpush.msra.mxu0 %v591
        %640 = vmatpush.msra.mxu0 %v589
        %641 = vmatpush.msra.mxu0 %v587
        %642 = vmatpush.msra.mxu0 %v585
        %643 = vmatpush.msra.mxu0 %v583
        %644 = vmatpush.msra.mxu0 %v581
        %645 = vmatpush.msra.mxu0 %v579
        %646 = vmatpush.msra.mxu0 %v577
        %647 = vmatpush.msra.mxu0 %v575
        %648 = vmatpush.msra.mxu0 %v573
        %649 = vmatmul.f32.gmra.mxu0 %v570
        %v650 = vpop.f32.mrf.mxu0
        %v651 = vadd.f32 %v607, %v650
        %652 = vmatmul.f32.gmra.mxu0 %v571
        %v653 = vpop.f32.mrf.mxu0
        %v654 = vadd.f32 %v607, %v653
        %655 = vdwg.mxu0
        %v656 = vmax.f32 %v628, 0.0
        %v657 = vmax.f32 %v651, 0.0
        %v658 = vmax.f32 %v631, 0.0
        %v659 = vmax.f32 %v654, 0.0
        %v660 = vld [vmem:[#allocation5] sm:$0xff]
        %v661 = vld [vmem:[#allocation5 + $0x8] sm:$0xff]
        %v662 = vld [vmem:[#allocation5 + $0x10] sm:$0xff]
        %v663 = vld [vmem:[#allocation5 + $0x18] sm:$0xff]
        %v664 = vld [vmem:[#allocation5 + $0x20] sm:$0xff]
        %v665 = vld [vmem:[#allocation5 + $0x28] sm:$0xff]
        %v666 = vld [vmem:[#allocation5 + $0x30] sm:$0xff]
        %v667 = vld [vmem:[#allocation5 + $0x38] sm:$0xff]
        %v668 = vld [vmem:[#allocation5 + $0x40] sm:$0xff]
        %v669 = vld [vmem:[#allocation5 + $0x48] sm:$0xff]
        %v670 = vld [vmem:[#allocation5 + $0x50] sm:$0xff]
        %v671 = vld [vmem:[#allocation5 + $0x58] sm:$0xff]
        %v672 = vld [vmem:[#allocation5 + $0x60] sm:$0xff]
        %v673 = vld [vmem:[#allocation5 + $0x68] sm:$0xff]
        %v674 = vld [vmem:[#allocation5 + $0x70] sm:$0xff]
        %v675 = vld [vmem:[#allocation5 + $0x78] sm:$0xff]
        %v676 = vld [vmem:[#allocation5 + $0x80] sm:$0xff]
        %v677 = vld [vmem:[#allocation5 + $0x88] sm:$0xff]
        %v678 = vld [vmem:[#allocation5 + $0x90] sm:$0xff]
        %v679 = vld [vmem:[#allocation5 + $0x98] sm:$0xff]
        %v680 = vld [vmem:[#allocation5 + $0xa0] sm:$0xff]
        %v681 = vld [vmem:[#allocation5 + $0xa8] sm:$0xff]
        %v682 = vld [vmem:[#allocation5 + $0xb0] sm:$0xff]
        %v683 = vld [vmem:[#allocation5 + $0xb8] sm:$0xff]
        %v684 = vld [vmem:[#allocation5 + $0xc0] sm:$0xff]
        %v685 = vld [vmem:[#allocation5 + $0xc8] sm:$0xff]
        %v686 = vld [vmem:[#allocation5 + $0xd0] sm:$0xff]
        %v687 = vld [vmem:[#allocation5 + $0xd8] sm:$0xff]
        %v688 = vld [vmem:[#allocation5 + $0xe0] sm:$0xff]
        %v689 = vld [vmem:[#allocation5 + $0xe8] sm:$0xff]
        %v690 = vld [vmem:[#allocation5 + $0xf0] sm:$0xff]
        %v691 = vld [vmem:[#allocation5 + $0xf8] sm:$0xff]
        %v692 = vld [vmem:[#allocation5 + $0x100] sm:$0xff]
        %v693 = vld [vmem:[#allocation5 + $0x108] sm:$0xff]
        %v694 = vld [vmem:[#allocation5 + $0x110] sm:$0xff]
        %v695 = vld [vmem:[#allocation5 + $0x118] sm:$0xff]
        %v696 = vld [vmem:[#allocation5 + $0x120] sm:$0xff]
        %v697 = vld [vmem:[#allocation5 + $0x128] sm:$0xff]
        %v698 = vld [vmem:[#allocation5 + $0x130] sm:$0xff]
        %v699 = vld [vmem:[#allocation5 + $0x138] sm:$0xff]
        %v700 = vld [vmem:[#allocation5 + $0x140] sm:$0xff]
        %v701 = vld [vmem:[#allocation5 + $0x148] sm:$0xff]
        %v702 = vld [vmem:[#allocation5 + $0x150] sm:$0xff]
        %v703 = vld [vmem:[#allocation5 + $0x158] sm:$0xff]
        %v704 = vld [vmem:[#allocation5 + $0x160] sm:$0xff]
        %v705 = vld [vmem:[#allocation5 + $0x168] sm:$0xff]
        %v706 = vld [vmem:[#allocation5 + $0x170] sm:$0xff]
        %v707 = vld [vmem:[#allocation5 + $0x178] sm:$0xff]
        %v708 = vld [vmem:[#allocation5 + $0x180] sm:$0xff]
        %v709 = vld [vmem:[#allocation5 + $0x188] sm:$0xff]
        %v710 = vld [vmem:[#allocation5 + $0x190] sm:$0xff]
        %v711 = vld [vmem:[#allocation5 + $0x198] sm:$0xff]
        %v712 = vld [vmem:[#allocation5 + $0x1a0] sm:$0xff]
        %v713 = vld [vmem:[#allocation5 + $0x1a8] sm:$0xff]
        %v714 = vld [vmem:[#allocation5 + $0x1b0] sm:$0xff]
        %v715 = vld [vmem:[#allocation5 + $0x1b8] sm:$0xff]
        %v716 = vld [vmem:[#allocation5 + $0x1c0] sm:$0xff]
        %v717 = vld [vmem:[#allocation5 + $0x1c8] sm:$0xff]
        %v718 = vld [vmem:[#allocation5 + $0x1d0] sm:$0xff]
        %v719 = vld [vmem:[#allocation5 + $0x1d8] sm:$0xff]
        %v720 = vld [vmem:[#allocation5 + $0x1e0] sm:$0xff]
        %v721 = vld [vmem:[#allocation5 + $0x1e8] sm:$0xff]
        %v722 = vld [vmem:[#allocation5 + $0x1f0] sm:$0xff]
        %v723 = vld [vmem:[#allocation5 + $0x1f8] sm:$0xff]
        %v724 = vld [vmem:[%s6] sm:$0x3]
        %v726 = vperm.slane %v724, 0
        %v727 = vperm.slane %v724, 1
        %730 = vmatpush.msra.mxu0 %v690
        %731 = vmatpush.msra.mxu0 %v688
        %732 = vmatpush.msra.mxu0 %v686
        %733 = vmatpush.msra.mxu0 %v684
        %734 = vmatpush.msra.mxu0 %v682
        %735 = vmatpush.msra.mxu0 %v680
        %736 = vmatpush.msra.mxu0 %v678
        %737 = vmatpush.msra.mxu0 %v676
        %738 = vmatpush.msra.mxu0 %v674
        %739 = vmatpush.msra.mxu0 %v672
        %740 = vmatpush.msra.mxu0 %v670
        %741 = vmatpush.msra.mxu0 %v668
        %742 = vmatpush.msra.mxu0 %v666
        %743 = vmatpush.msra.mxu0 %v664
        %744 = vmatpush.msra.mxu0 %v662
        %745 = vmatpush.msra.mxu0 %v660
        %746 = vmatmul.f32.gmra.mxu0 %v656
        %v747 = vpop.f32.mrf.mxu0
        %v748 = vadd.f32 %v726, %v747
        %749 = vmatmul.f32.gmra.mxu0 %v658
        %v750 = vpop.f32.mrf.mxu0
        %v751 = vadd.f32 %v726, %v750
        %752 = vdwg.mxu0
        %753 = vmatpush.msra.mxu0 %v722
        %754 = vmatpush.msra.mxu0 %v720
        %755 = vmatpush.msra.mxu0 %v718
        %756 = vmatpush.msra.mxu0 %v716
        %757 = vmatpush.msra.mxu0 %v714
        %758 = vmatpush.msra.mxu0 %v712
        %759 = vmatpush.msra.mxu0 %v710
        %760 = vmatpush.msra.mxu0 %v708
        %761 = vmatpush.msra.mxu0 %v706
        %762 = vmatpush.msra.mxu0 %v704
        %763 = vmatpush.msra.mxu0 %v702
        %764 = vmatpush.msra.mxu0 %v700
        %765 = vmatpush.msra.mxu0 %v698
        %766 = vmatpush.msra.mxu0 %v696
        %767 = vmatpush.msra.mxu0 %v694
        %768 = vmatpush.msra.mxu0 %v692
        %769 = vmatmul.f32.gmra.mxu0 %v657
        %v770 = vpop.f32.mrf.mxu0
        %v771 = vadd.f32 %v748, %v770
        %772 = vmatmul.f32.gmra.mxu0 %v659
        %v773 = vpop.f32.mrf.mxu0
        %v774 = vadd.f32 %v751, %v773
        %775 = vdwg.mxu0
        %776 = vmatpush.msra.mxu0 %v691
        %777 = vmatpush.msra.mxu0 %v689
        %778 = vmatpush.msra.mxu0 %v687
        %779 = vmatpush.msra.mxu0 %v685
        %780 = vmatpush.msra.mxu0 %v683
        %781 = vmatpush.msra.mxu0 %v681
        %782 = vmatpush.msra.mxu0 %v679
        %783 = vmatpush.msra.mxu0 %v677
        %784 = vmatpush.msra.mxu0 %v675
        %785 = vmatpush.msra.mxu0 %v673
        %786 = vmatpush.msra.mxu0 %v671
        %787 = vmatpush.msra.mxu0 %v669
        %788 = vmatpush.msra.mxu0 %v667
        %789 = vmatpush.msra.mxu0 %v665
        %790 = vmatpush.msra.mxu0 %v663
        %791 = vmatpush.msra.mxu0 %v661
        %792 = vmatmul.f32.gmra.mxu0 %v656
        %v793 = vpop.f32.mrf.mxu0
        %v794 = vadd.f32 %v727, %v793
        %795 = vmatmul.f32.gmra.mxu0 %v658
        %v796 = vpop.f32.mrf.mxu0
        %v797 = vadd.f32 %v727, %v796
        %798 = vdwg.mxu0
        %799 = vmatpush.msra.mxu0 %v723
        %800 = vmatpush.msra.mxu0 %v721
        %801 = vmatpush.msra.mxu0 %v719
        %802 = vmatpush.msra.mxu0 %v717
        %803 = vmatpush.msra.mxu0 %v715
        %804 = vmatpush.msra.mxu0 %v713
        %805 = vmatpush.msra.mxu0 %v711
        %806 = vmatpush.msra.mxu0 %v709
        %807 = vmatpush.msra.mxu0 %v707
        %808 = vmatpush.msra.mxu0 %v705
        %809 = vmatpush.msra.mxu0 %v703
        %810 = vmatpush.msra.mxu0 %v701
        %811 = vmatpush.msra.mxu0 %v699
        %812 = vmatpush.msra.mxu0 %v697
        %813 = vmatpush.msra.mxu0 %v695
        %814 = vmatpush.msra.mxu0 %v693
        %815 = vmatmul.f32.gmra.mxu0 %v657
        %v816 = vpop.f32.mrf.mxu0
        %v817 = vadd.f32 %v794, %v816
        %818 = vmatmul.f32.gmra.mxu0 %v659
        %v819 = vpop.f32.mrf.mxu0
        %v820 = vadd.f32 %v797, %v819
        %821 = vdwg.mxu0
        %v822 = vmax.f32 %v771, 0.0
        %v823 = vmax.f32 %v817, 0.0
        %v824 = vmax.f32 %v774, 0.0
        %v825 = vmax.f32 %v820, 0.0
        %v826 = vld [vmem:[#allocation7] sm:$0xff]
        %v827 = vld [vmem:[#allocation7 + $0x8] sm:$0xff]
        %v828 = vld [vmem:[#allocation7 + $0x10] sm:$0xff]
        %v829 = vld [vmem:[#allocation7 + $0x18] sm:$0xff]
        %v830 = vld [vmem:[#allocation7 + $0x20] sm:$0xff]
        %v831 = vld [vmem:[#allocation7 + $0x28] sm:$0xff]
        %v832 = vld [vmem:[#allocation7 + $0x30] sm:$0xff]
        %v833 = vld [vmem:[#allocation7 + $0x38] sm:$0xff]
        %v834 = vld [vmem:[#allocation7 + $0x40] sm:$0xff]
        %v835 = vld [vmem:[#allocation7 + $0x48] sm:$0xff]
        %v836 = vld [vmem:[#allocation7 + $0x50] sm:$0xff]
        %v837 = vld [vmem:[#allocation7 + $0x58] sm:$0xff]
        %v838 = vld [vmem:[#allocation7 + $0x60] sm:$0xff]
        %v839 = vld [vmem:[#allocation7 + $0x68] sm:$0xff]
        %v840 = vld [vmem:[#allocation7 + $0x70] sm:$0xff]
        %v841 = vld [vmem:[#allocation7 + $0x78] sm:$0xff]
        %v842 = vld [vmem:[#allocation7 + $0x80] sm:$0xff]
        %v843 = vld [vmem:[#allocation7 + $0x88] sm:$0xff]
        %v844 = vld [vmem:[#allocation7 + $0x90] sm:$0xff]
        %v845 = vld [vmem:[#allocation7 + $0x98] sm:$0xff]
        %v846 = vld [vmem:[#allocation7 + $0xa0] sm:$0xff]
        %v847 = vld [vmem:[#allocation7 + $0xa8] sm:$0xff]
        %v848 = vld [vmem:[#allocation7 + $0xb0] sm:$0xff]
        %v849 = vld [vmem:[#allocation7 + $0xb8] sm:$0xff]
        %v850 = vld [vmem:[#allocation7 + $0xc0] sm:$0xff]
        %v851 = vld [vmem:[#allocation7 + $0xc8] sm:$0xff]
        %v852 = vld [vmem:[#allocation7 + $0xd0] sm:$0xff]
        %v853 = vld [vmem:[#allocation7 + $0xd8] sm:$0xff]
        %v854 = vld [vmem:[#allocation7 + $0xe0] sm:$0xff]
        %v855 = vld [vmem:[#allocation7 + $0xe8] sm:$0xff]
        %v856 = vld [vmem:[#allocation7 + $0xf0] sm:$0xff]
        %v857 = vld [vmem:[#allocation7 + $0xf8] sm:$0xff]
        %v858 = vld [vmem:[%s8] sm:$0x1]
        %v860 = vperm.slane %v858, 0
        %862 = vmatpush.msra.mxu0 %v841
        %863 = vmatpush.msra.mxu0 %v840
        %864 = vmatpush.msra.mxu0 %v839
        %865 = vmatpush.msra.mxu0 %v838
        %866 = vmatpush.msra.mxu0 %v837
        %867 = vmatpush.msra.mxu0 %v836
        %868 = vmatpush.msra.mxu0 %v835
        %869 = vmatpush.msra.mxu0 %v834
        %870 = vmatpush.msra.mxu0 %v833
        %871 = vmatpush.msra.mxu0 %v832
        %872 = vmatpush.msra.mxu0 %v831
        %873 = vmatpush.msra.mxu0 %v830
        %874 = vmatpush.msra.mxu0 %v829
        %875 = vmatpush.msra.mxu0 %v828
        %876 = vmatpush.msra.mxu0 %v827
        %877 = vmatpush.msra.mxu0 %v826
        %878 = vmatmul.f32.gmra.mxu0 %v822
        %v879 = vpop.f32.mrf.mxu0
        %v880 = vadd.f32 %v860, %v879
        %881 = vmatmul.f32.gmra.mxu0 %v824
        %v882 = vpop.f32.mrf.mxu0
        %v883 = vadd.f32 %v860, %v882
        %884 = vdwg.mxu0
        %885 = vmatpush.msra.mxu0 %v857
        %886 = vmatpush.msra.mxu0 %v856
        %887 = vmatpush.msra.mxu0 %v855
        %888 = vmatpush.msra.mxu0 %v854
        %889 = vmatpush.msra.mxu0 %v853
        %890 = vmatpush.msra.mxu0 %v852
        %891 = vmatpush.msra.mxu0 %v851
        %892 = vmatpush.msra.mxu0 %v850
        %893 = vmatpush.msra.mxu0 %v849
        %894 = vmatpush.msra.mxu0 %v848
        %895 = vmatpush.msra.mxu0 %v847
        %896 = vmatpush.msra.mxu0 %v846
        %897 = vmatpush.msra.mxu0 %v845
        %898 = vmatpush.msra.mxu0 %v844
        %899 = vmatpush.msra.mxu0 %v843
        %900 = vmatpush.msra.mxu0 %v842
        %901 = vmatmul.f32.gmra.mxu0 %v823
        %v902 = vpop.f32.mrf.mxu0
        %v903 = vadd.f32 %v880, %v902
        %904 = vmatmul.f32.gmra.mxu0 %v825
        %v905 = vpop.f32.mrf.mxu0
        %v906 = vadd.f32 %v883, %v905
        %907 = vdwg.mxu0
        %v908 = vmax.f32 %v903, 0.0
        %v909 = vmax.f32 %v906, 0.0
        %v910 = vld [vmem:[#allocation8] sm:$0xff]
        %v911 = vld [vmem:[#allocation8 + $0x8] sm:$0xff]
        %v912 = vld [vmem:[#allocation8 + $0x10] sm:$0xff]
        %v913 = vld [vmem:[#allocation8 + $0x18] sm:$0xff]
        %v914 = vld [vmem:[#allocation8 + $0x20] sm:$0xff]
        %v915 = vld [vmem:[#allocation8 + $0x28] sm:$0xff]
        %v916 = vld [vmem:[#allocation8 + $0x30] sm:$0xff]
        %v917 = vld [vmem:[#allocation8 + $0x38] sm:$0xff]
        %v918 = vld [vmem:[#allocation8 + $0x40] sm:$0xff]
        %v919 = vld [vmem:[#allocation8 + $0x48] sm:$0xff]
        %v920 = vld [vmem:[#allocation8 + $0x50] sm:$0xff]
        %v921 = vld [vmem:[#allocation8 + $0x58] sm:$0xff]
        %v922 = vld [vmem:[#allocation8 + $0x60] sm:$0xff]
        %v923 = vld [vmem:[#allocation8 + $0x68] sm:$0xff]
        %v924 = vld [vmem:[#allocation8 + $0x70] sm:$0xff]
        %v925 = vld [vmem:[#allocation8 + $0x78] sm:$0xff]
        %v926 = vld [vmem:[%s10] sm:$0x1]
        %v928 = vperm.slane %v926, 0
        %930 = vmatpush.msra.mxu0 %v925
        %931 = vmatpush.msra.mxu0 %v924
        %932 = vmatpush.msra.mxu0 %v923
        %933 = vmatpush.msra.mxu0 %v922
        %934 = vmatpush.msra.mxu0 %v921
        %935 = vmatpush.msra.mxu0 %v920
        %936 = vmatpush.msra.mxu0 %v919
        %937 = vmatpush.msra.mxu0 %v918
        %938 = vmatpush.msra.mxu0 %v917
        %939 = vmatpush.msra.mxu0 %v916
        %940 = vmatpush.msra.mxu0 %v915
        %941 = vmatpush.msra.mxu0 %v914
        %942 = vmatpush.msra.mxu0 %v913
        %943 = vmatpush.msra.mxu0 %v912
        %944 = vmatpush.msra.mxu0 %v911
        %945 = vmatpush.msra.mxu0 %v910
        %946 = vmatmul.f32.gmra.mxu0 %v908
        %v947 = vpop.f32.mrf.mxu0
        %v948 = vadd.f32 %v928, %v947
        %949 = vmatmul.f32.gmra.mxu0 %v909
        %v950 = vpop.f32.mrf.mxu0
        %v951 = vadd.f32 %v928, %v950
        %952 = vdwg.mxu0
        %953 = vst [vmem:[%s447] sm:$0xff] %v948
        %954 = vst [vmem:[%s447 + $0x8] sm:$0xff] %v951
        %s955 = sand.u32 %s272, 1
        %s956 = scalar_lea.sflag [#allocation4], %s955
        %s957 = sand.u32 %s272, 1
        %s958 = smul.addr %s957, 16
        %s959 = scalar_lea.vmem [#allocation10], %s958
        // Predicated region
        $region81: #{tpu_custom_call.1} parent=63 // pred_check
          %p960 = pneg %p282
        $region82: #{tpu_custom_call.1} parent=63 // pred_check_branch
          %962 = sbr.rel (%p960) target = $region84
        $region83: #{tpu_custom_call.1} parent=63 // pred_region
          %s963 = smul.u32 2, %s28
          %965 = vsyncadd %s956, 0
          %s966 = smul.addr %s963, 8
          %s967 = scalar_lea.hbm %s11, %s966
          %s968 = sshll.u32 %s959, 4
          %s969 = int_to_ptr.vmem [resolvable:$true] %s968
          %s970 = sshll.u32 %s967, 4
          %s971 = int_to_ptr.hbm [resolvable:$true] %s970
          %976 = dma.vmem_to_hbm [thread:$0]  %s969, 256, %s971, %s956, 128, 128, 8
        $region84: #{tpu_custom_call.1} parent=63 // pred_fallthru
          _
      $region64: #{tpu_custom_call.1} parent=5 // pred_fallthru
        _
      %p977 = scmp.le.s32.totalorder 2, %s23
      // Predicated region
      $region85: #{tpu_custom_call.1} parent=5 // pred_check
        %p978 = pneg %p977
      $region86: #{tpu_custom_call.1} parent=5 // pred_check_branch
        %980 = sbr.rel (%p978) target = $region88
      $region87: #{tpu_custom_call.1} parent=5 // pred_region
        %s981 = ssub.s32 %s23, 2
        // Predicated region
        $region89: #{tpu_custom_call.1} parent=87 // pred_check
          %p982 = pneg %p288
        $region90: #{tpu_custom_call.1} parent=87 // pred_check_branch
          %984 = sbr.rel (%p982) target = $region92
        $region91: #{tpu_custom_call.1} parent=87 // pred_region
          %s985 = sand.u32 %s273, 1
          %s986 = scalar_lea.sflag [#allocation4], %s985
          %s987 = sand.u32 %s273, 1
          %s988 = smul.addr %s987, 16
          %s989 = scalar_lea.vmem [#allocation10], %s988
          %991 = dma.done %s986, 256
        $region92: #{tpu_custom_call.1} parent=87 // pred_fallthru
          _
      $region88: #{tpu_custom_call.1} parent=5 // pred_fallthru
        _
    $region6: #{tpu_custom_call.1} parent=1 // loop_footer
      %s27 = sadd.s32 1, %s23
    $region7: #{tpu_custom_call.1} parent=1 // loop_footer_branch
      %22 = sbr.rel target = $region3
    $region8: #{tpu_custom_call.1} parent=1 // loop_exit
      _
    %992 = vsyncpa [#allocation3], 1
    %s993 = scalar_lea.sflag [#allocation3], 1
    %994 = vsyncpa %s993, 1
    %995 = vsyncpa [#allocation6], 1
    %996 = vsyncpa [#allocation9], 1
    %997 = vsyncpa [#allocation4], 1
    %s998 = scalar_lea.sflag [#allocation4], 1
    %999 = vsyncpa %s998, 1

</llo_original>
